<compile_context>
chip_gen: v7x
topology: tpu7x:2x2x1
jax: 0.10.0
libtpu: 0.0.40
codegen_flags: <defaults>
</compile_context>

<pallas_src>
import numpy as np
import jax
import jax.numpy as jnp
from jax.experimental import pallas as pl
from jax.experimental.pallas import tpu as pltpu


def _rn_loss_kernel(gtb_ref, gtl_ref, box_ref, score_ref, label_ref, loss_ref):
    """gtb_ref:   [G, 4] f32  (y1, x1, y2, x2)
       gtl_ref:   [G, 1] i32  class ids
       box_ref:   [4, N] f32  (rows: y1, x1, y2, x2)
       score_ref: [1, N] f32
       label_ref: [1, N] i32  class ids
       loss_ref:  [1, 1] f32  SMEM scalar output."""
    N = score_ref.shape[1]

    # ground-truth fields as [G,1] columns (broadcast along lanes),
    # detection fields as [1,N] rows (broadcast along sublanes)
    gty1 = gtb_ref[:, 0:1]
    gtx1 = gtb_ref[:, 1:2]
    gty2 = gtb_ref[:, 2:3]
    gtx2 = gtb_ref[:, 3:4]
    gtlab = gtl_ref[:, 0:1]                       # [G,1] i32

    dy1 = box_ref[0:1, :]
    dx1 = box_ref[1:2, :]
    dy2 = box_ref[2:3, :]
    dx2 = box_ref[3:4, :]
    score = score_ref[...]                        # [1,N] f32
    dlab = label_ref[...]                         # [1,N] i32

    # ---- pairwise intersection, same semantics as bbox_iou (ymin,xmin,ymax,xmax) ----
    tl_y = jnp.maximum(gty1, dy1)                 # [G,N]
    tl_x = jnp.maximum(gtx1, dx1)
    br_y = jnp.minimum(gty2, dy2)
    br_x = jnp.minimum(gtx2, dx2)
    valid = (tl_y < br_y) & (tl_x < br_x)
    area_i = jnp.where(valid, (br_y - tl_y) * (br_x - tl_x), 0.0)
    area_gt = (gty2 - gty1) * (gtx2 - gtx1)       # [G,1]
    area_d = (dy2 - dy1) * (dx2 - dx1)            # [1,N]

    # iou > 0.5  <=>  3*area_i > area_gt + area_d   (no divide, no 0/0 NaN)
    match = valid & (3.0 * area_i > area_gt + area_d) & (dlab == gtlab)    # [G,N]

    # per-gt winner: matching detection with max score, tie-break lowest original index
    # (the reference sorts by descending score; loss value is invariant to which
    #  equal-score tie is picked, so any single winner per gt reproduces it exactly)
    col = jax.lax.broadcasted_iota(jnp.int32, (1, N), 1)                   # [1,N]
    best = jnp.max(jnp.where(match, score, -1e30), axis=1, keepdims=True)  # [G,1]
    cand = match & (score == best)                                         # [G,N]
    first = jnp.min(jnp.where(cand, col, N), axis=1, keepdims=True)        # [G,1] i32
    pos = jnp.any((col == first) & (first < N), axis=0, keepdims=True)     # [1,N] bool

    # ---- binary cross-entropy; nms_gt is {0,1} so a single fused log suffices ----
    eps = 1e-8
    ll = jnp.log(jnp.where(pos, score + eps, 1.0 - score + eps))           # [1,N]
    loss_ref[0, 0] = jnp.sum(ll) * (-1.0 / N)


def relation_networks_loss(gt_bboxes, gt_labels, nms_scores, sorted_labels,
                           sorted_cls_bboxes):
    """JAX/Pallas port of RelationNetworksLoss.forward (module has no parameters)."""
    if nms_scores is None:
        return [1.0]

    f32, i32 = jnp.float32, jnp.int32
    boxes_t = jnp.asarray(sorted_cls_bboxes, f32).T              # [4, N]
    scores = jnp.asarray(nms_scores, f32)[None, :]               # [1, N]
    labels = jnp.asarray(sorted_labels).astype(i32)[None, :]     # [1, N]
    gtb = jnp.asarray(gt_bboxes[0], f32)                         # [G, 4]
    gtl = jnp.asarray(gt_labels[0]).astype(i32)[:, None]         # [G, 1]
    N = scores.shape[1]
    G = gtb.shape[0]

    # Tiny, latency-bound op: tell XLA so it packs it tightly in a larger jit.
    cost = pl.CostEstimate(
        flops=30 * G * N,
        transcendentals=N,
        bytes_accessed=4 * (4 * N + 2 * N + 4 * G + G + 1),
    )

    loss = pl.pallas_call(
        _rn_loss_kernel,
        out_shape=jax.ShapeDtypeStruct((1, 1), jnp.float32),
        in_specs=[pl.BlockSpec(memory_space=pltpu.MemorySpace.VMEM)] * 5,
        out_specs=pl.BlockSpec(memory_space=pltpu.MemorySpace.SMEM),
        cost_estimate=cost,
    )(gtb, gtl, boxes_t, scores, labels)
    return [loss[0, 0]]


def _reference(gt_bboxes, gt_labels, nms_scores, sorted_labels, sorted_cls_bboxes):
    """NumPy replica of the PyTorch forward (including bbox_iou) for validation."""
    order = np.argsort(-nms_scores)
    sorted_score = nms_scores[order]
    scb = sorted_cls_bboxes[order]
    sl = sorted_labels[order]
    nms_gt = np.zeros_like(sorted_score)
    eps = 1e-8
    a, b = gt_bboxes[0], scb
    tl = np.maximum(a[:, None, :2], b[:, :2])
    br = np.minimum(a[:, None, 2:], b[:, 2:])
    area_i = np.prod(br - tl, axis=2) * (tl < br).all(axis=2)
    area_a = np.prod(a[:, 2:] - a[:, :2], axis=1)
    area_b = np.prod(b[:, 2:] - b[:, :2], axis=1)
    iou = area_i / (area_a[:, None] + area_b - area_i)
    for gt_idx in range(len(iou)):
        accept_iou = np.reshape(np.argwhere(iou[gt_idx] > 0.5), -1)
        accept_label = np.reshape(
            np.argwhere(sl[accept_iou] == gt_labels[0][gt_idx]), -1)
        if not len(accept_label) == 0:
            nms_gt[accept_iou[accept_label[0]]] = 1.0
    loss = nms_gt * np.log(sorted_score + eps) + (1 - nms_gt) * np.log(1 - sorted_score + eps)
    return -loss.mean()


if __name__ == "__main__":
    key = jax.random.PRNGKey(0)
    G, N, C = 8, 128, 5
    k1, k2, k3, k4, k5, k6, k7, k8 = jax.random.split(key, 8)

    # ground-truth boxes (ymin, xmin, ymax, xmax)
    tl = jax.random.uniform(k1, (G, 2), minval=0.0, maxval=60.0)
    wh = jax.random.uniform(k2, (G, 2), minval=10.0, maxval=40.0)
    gt_boxes = jnp.concatenate([tl, tl + wh], axis=-1)            # [G, 4]
    gt_bboxes = gt_boxes[None]                                    # [1, G, 4]
    gt_labels = jax.random.randint(k3, (1, G), 0, C)              # [1, G]

    # detections: 2*G jittered copies of gt boxes (correct labels) + random boxes
    jitter = jax.random.uniform(k4, (2 * G, 4), minval=-2.0, maxval=2.0)
    near = jnp.tile(gt_boxes, (2, 1)) + jitter
    rtl = jax.random.uniform(k5, (N - 2 * G, 2), minval=0.0, maxval=60.0)
    rwh = jax.random.uniform(k8, (N - 2 * G, 2), minval=10.0, maxval=40.0)
    rand_boxes = jnp.concatenate([rtl, rtl + rwh], axis=-1)
    det_boxes = jnp.concatenate([near, rand_boxes], axis=0)        # [N, 4]
    det_labels = jnp.concatenate(
        [jnp.tile(gt_labels[0], (2,)),
         jax.random.randint(k6, (N - 2 * G,), 0, C)], axis=0)      # [N]
    nms_scores = jax.random.uniform(k7, (N,), minval=0.01, maxval=0.99)

    out = relation_networks_loss(gt_bboxes, gt_labels, nms_scores, det_labels, det_boxes)
    loss = jax.block_until_ready(out[0])

    ref = _reference(np.asarray(gt_bboxes, np.float32), np.asarray(gt_labels),
                     np.asarray(nms_scores, np.float32), np.asarray(det_labels),
                     np.asarray(det_boxes, np.float32))
    assert np.allclose(float(loss), float(ref), rtol=1e-4, atol=1e-4), (float(loss), float(ref))
    print("KERNEL_OK")
</pallas_src>

<mosaic_0001>
module attributes {stable_mosaic.version = 11 : i64} {
  func.func @_rn_loss_kernel(%arg0: memref<8x4xf32, #tpu.memory_space<vmem>>, %arg1: memref<8x1xi32, #tpu.memory_space<vmem>>, %arg2: memref<4x128xf32, #tpu.memory_space<vmem>>, %arg3: memref<1x128xf32, #tpu.memory_space<vmem>>, %arg4: memref<1x128xi32, #tpu.memory_space<vmem>>, %arg5: memref<1x1xf32, #tpu.memory_space<smem>>) attributes {dimension_semantics = [], scalar_prefetch = 0 : i64, scratch_operands = 0 : i64, tpu.core_type = #tpu.core_type<tc>} {
    %c0 = arith.constant 0 : index
    %c0_0 = arith.constant 0 : index
    %0 = vector.load %arg0[%c0, %c0_0] : memref<8x4xf32, #tpu.memory_space<vmem>>, vector<8x1xf32>
    %c0_1 = arith.constant 0 : index
    %c1 = arith.constant 1 : index
    %1 = vector.load %arg0[%c0_1, %c1] : memref<8x4xf32, #tpu.memory_space<vmem>>, vector<8x1xf32>
    %c0_2 = arith.constant 0 : index
    %c2 = arith.constant 2 : index
    %2 = vector.load %arg0[%c0_2, %c2] : memref<8x4xf32, #tpu.memory_space<vmem>>, vector<8x1xf32>
    %c0_3 = arith.constant 0 : index
    %c3 = arith.constant 3 : index
    %3 = vector.load %arg0[%c0_3, %c3] : memref<8x4xf32, #tpu.memory_space<vmem>>, vector<8x1xf32>
    %c0_4 = arith.constant 0 : index
    %c0_5 = arith.constant 0 : index
    %4 = vector.load %arg1[%c0_4, %c0_5] : memref<8x1xi32, #tpu.memory_space<vmem>>, vector<8x1xi32>
    %c0_6 = arith.constant 0 : index
    %c0_7 = arith.constant 0 : index
    %5 = vector.load %arg2[%c0_6, %c0_7] : memref<4x128xf32, #tpu.memory_space<vmem>>, vector<1x128xf32>
    %c1_8 = arith.constant 1 : index
    %c0_9 = arith.constant 0 : index
    %6 = vector.load %arg2[%c1_8, %c0_9] : memref<4x128xf32, #tpu.memory_space<vmem>>, vector<1x128xf32>
    %c2_10 = arith.constant 2 : index
    %c0_11 = arith.constant 0 : index
    %7 = vector.load %arg2[%c2_10, %c0_11] : memref<4x128xf32, #tpu.memory_space<vmem>>, vector<1x128xf32>
    %c3_12 = arith.constant 3 : index
    %c0_13 = arith.constant 0 : index
    %8 = vector.load %arg2[%c3_12, %c0_13] : memref<4x128xf32, #tpu.memory_space<vmem>>, vector<1x128xf32>
    %c0_14 = arith.constant 0 : index
    %c0_15 = arith.constant 0 : index
    %9 = vector.load %arg3[%c0_14, %c0_15] : memref<1x128xf32, #tpu.memory_space<vmem>>, vector<1x128xf32>
    %c0_16 = arith.constant 0 : index
    %c0_17 = arith.constant 0 : index
    %10 = vector.load %arg4[%c0_16, %c0_17] : memref<1x128xi32, #tpu.memory_space<vmem>>, vector<1x128xi32>
    %11 = vector.broadcast %0 : vector<8x1xf32> to vector<8x128xf32>
    %12 = vector.broadcast %5 : vector<1x128xf32> to vector<8x128xf32>
    %13 = arith.maximumf %11, %12 : vector<8x128xf32>
    %14 = vector.broadcast %1 : vector<8x1xf32> to vector<8x128xf32>
    %15 = vector.broadcast %6 : vector<1x128xf32> to vector<8x128xf32>
    %16 = arith.maximumf %14, %15 : vector<8x128xf32>
    %17 = vector.broadcast %2 : vector<8x1xf32> to vector<8x128xf32>
    %18 = vector.broadcast %7 : vector<1x128xf32> to vector<8x128xf32>
    %19 = arith.minimumf %17, %18 : vector<8x128xf32>
    %20 = vector.broadcast %3 : vector<8x1xf32> to vector<8x128xf32>
    %21 = vector.broadcast %8 : vector<1x128xf32> to vector<8x128xf32>
    %22 = arith.minimumf %20, %21 : vector<8x128xf32>
    %23 = arith.cmpf olt, %13, %19 : vector<8x128xf32>
    %24 = arith.cmpf olt, %16, %22 : vector<8x128xf32>
    %25 = arith.andi %23, %24 : vector<8x128xi1>
    %26 = arith.subf %19, %13 : vector<8x128xf32>
    %27 = arith.subf %22, %16 : vector<8x128xf32>
    %28 = arith.mulf %26, %27 : vector<8x128xf32>
    %cst = arith.constant 0.000000e+00 : f32
    %29 = vector.broadcast %cst : f32 to vector<8x128xf32>
    %30 = arith.select %25, %28, %29 : vector<8x128xi1>, vector<8x128xf32>
    %31 = arith.subf %2, %0 : vector<8x1xf32>
    %32 = arith.subf %3, %1 : vector<8x1xf32>
    %33 = arith.mulf %31, %32 : vector<8x1xf32>
    %34 = arith.subf %7, %5 : vector<1x128xf32>
    %35 = arith.subf %8, %6 : vector<1x128xf32>
    %36 = arith.mulf %34, %35 : vector<1x128xf32>
    %cst_18 = arith.constant 3.000000e+00 : f32
    %37 = vector.broadcast %cst_18 : f32 to vector<8x128xf32>
    %38 = arith.mulf %37, %30 : vector<8x128xf32>
    %39 = vector.broadcast %33 : vector<8x1xf32> to vector<8x128xf32>
    %40 = vector.broadcast %36 : vector<1x128xf32> to vector<8x128xf32>
    %41 = arith.addf %39, %40 : vector<8x128xf32>
    %42 = arith.cmpf ogt, %38, %41 : vector<8x128xf32>
    %43 = arith.andi %25, %42 : vector<8x128xi1>
    %44 = vector.broadcast %10 : vector<1x128xi32> to vector<8x128xi32>
    %45 = vector.broadcast %4 : vector<8x1xi32> to vector<8x128xi32>
    %46 = arith.cmpi eq, %44, %45 : vector<8x128xi32>
    %47 = arith.andi %43, %46 : vector<8x128xi1>
    %48 = tpu.iota {dimensions = array<i32: 1>} : vector<1x128xi32>
    %cst_19 = arith.constant -1.000000e+30 : f32
    %49 = vector.shape_cast %9 : vector<1x128xf32> to vector<1x128xf32>
    %50 = vector.broadcast %49 : vector<1x128xf32> to vector<8x128xf32>
    %51 = vector.broadcast %cst_19 : f32 to vector<8x128xf32>
    %52 = arith.select %47, %50, %51 : vector<8x128xi1>, vector<8x128xf32>
    %cst_20 = arith.constant dense<0xFF800000> : vector<8xf32>
    %53 = vector.multi_reduction <maximumf>, %52, %cst_20 [1] : vector<8x128xf32> to vector<8xf32>
    %54 = vector.shape_cast %53 : vector<8xf32> to vector<8x1xf32>
    %55 = vector.broadcast %9 : vector<1x128xf32> to vector<8x128xf32>
    %56 = vector.broadcast %54 : vector<8x1xf32> to vector<8x128xf32>
    %57 = arith.cmpf oeq, %55, %56 : vector<8x128xf32>
    %58 = arith.andi %47, %57 : vector<8x128xi1>
    %c128_i32 = arith.constant 128 : i32
    %59 = vector.shape_cast %48 : vector<1x128xi32> to vector<1x128xi32>
    %60 = vector.broadcast %59 : vector<1x128xi32> to vector<8x128xi32>
    %61 = vector.broadcast %c128_i32 : i32 to vector<8x128xi32>
    %62 = arith.select %58, %60, %61 : vector<8x128xi1>, vector<8x128xi32>
    %cst_21 = arith.constant dense<2147483647> : vector<8xi32>
    %63 = vector.multi_reduction <minsi>, %62, %cst_21 [1] : vector<8x128xi32> to vector<8xi32>
    %64 = vector.shape_cast %63 : vector<8xi32> to vector<8x1xi32>
    %65 = vector.broadcast %48 : vector<1x128xi32> to vector<8x128xi32>
    %66 = vector.broadcast %64 : vector<8x1xi32> to vector<8x128xi32>
    %67 = arith.cmpi eq, %65, %66 : vector<8x128xi32>
    %c128_i32_22 = arith.constant 128 : i32
    %68 = vector.broadcast %c128_i32_22 : i32 to vector<8x1xi32>
    %69 = arith.cmpi slt, %64, %68 : vector<8x1xi32>
    %70 = vector.broadcast %69 : vector<8x1xi1> to vector<8x128xi1>
    %71 = arith.andi %67, %70 : vector<8x128xi1>
    %cst_23 = arith.constant 1.000000e+00 : f32
    %cst_24 = arith.constant 0.000000e+00 : f32
    %72 = vector.broadcast %cst_23 : f32 to vector<8x128xf32>
    %73 = vector.broadcast %cst_24 : f32 to vector<8x128xf32>
    %74 = arith.select %71, %72, %73 : vector<8x128xi1>, vector<8x128xf32>
    %cst_25 = arith.constant dense<0xFF800000> : vector<128xf32>
    %75 = vector.multi_reduction <maximumf>, %74, %cst_25 [0] : vector<8x128xf32> to vector<128xf32>
    %cst_26 = arith.constant 0.000000e+00 : f32
    %76 = vector.broadcast %cst_26 : f32 to vector<128xf32>
    %77 = arith.cmpf ogt, %75, %76 : vector<128xf32>
    %78 = vector.shape_cast %77 : vector<128xi1> to vector<1x128xi1>
    %cst_27 = arith.constant 9.99999993E-9 : f32
    %79 = vector.broadcast %cst_27 : f32 to vector<1x128xf32>
    %80 = arith.addf %9, %79 : vector<1x128xf32>
    %cst_28 = arith.constant 1.000000e+00 : f32
    %81 = vector.broadcast %cst_28 : f32 to vector<1x128xf32>
    %82 = arith.subf %81, %9 : vector<1x128xf32>
    %cst_29 = arith.constant 9.99999993E-9 : f32
    %83 = vector.broadcast %cst_29 : f32 to vector<1x128xf32>
    %84 = arith.addf %82, %83 : vector<1x128xf32>
    %85 = arith.select %78, %80, %84 : vector<1x128xi1>, vector<1x128xf32>
    %86 = math.log %85 : vector<1x128xf32>
    %87 = vector.shape_cast %86 : vector<1x128xf32> to vector<1x1x128xf32>
    %cst_30 = arith.constant dense<0.000000e+00> : vector<1xf32>
    %88 = vector.multi_reduction <add>, %87, %cst_30 [1, 2] : vector<1x1x128xf32> to vector<1xf32>
    %89 = vector.shape_cast %88 : vector<1xf32> to vector<1x1x1xf32>
    %90 = vector.extract %89[0, 0, 0] : f32 from vector<1x1x1xf32>
    %cst_31 = arith.constant -7.812500e-03 : f32
    %91 = arith.mulf %90, %cst_31 : f32
    %c0_32 = arith.constant 0 : index
    %c0_33 = arith.constant 0 : index
    %92 = memref.load %arg5[%c0_32, %c0_33] : memref<1x1xf32, #tpu.memory_space<smem>>
    memref.store %91, %arg5[%c0_32, %c0_33] : memref<1x1xf32, #tpu.memory_space<smem>>
    return
  }
}

</mosaic_0001>

<llo_original>
// kernel: tpu_custom_call.1
$region0: #{tpu_custom_call.1}
  #allocation0 [shape = 'u32[]', space=smem, size = 0x4, offset = 0x4, fixed_abs, tag = 'smem constant byte address 0x4 - core index']
  #allocation1 [shape = 'u32[144,128]{1,0:T(1,128)}', space=vmem, size = 0x12000, scoped, tag = 'internal scratch']
  %s0 = inlined_call_operand.vmem [shape: f32[8,4], index: 0, kind: input, shape index: {}]
  %s1 = inlined_call_operand.vmem [shape: s32[8,1], index: 1, kind: input, shape index: {}]
  %s2 = inlined_call_operand.vmem [shape: f32[4,128], index: 2, kind: input, shape index: {}]
  %s3 = inlined_call_operand.vmem [shape: f32[1,128], index: 3, kind: input, shape index: {}]
  %s4 = inlined_call_operand.vmem [shape: s32[1,128], index: 4, kind: input, shape index: {}]
  %s5 = inlined_call_operand.hbm [shape: f32[1,1], index: 5, kind: output, shape index: {}]
  %s6 = sld [smem:[#allocation0]]
  $region30: #{tpu_custom_call.1} parent=0
    _
  %s8 = ssub.s32 1, %s6
  %s9 = scalar_select 0, %s8, %s6
  $region1: #{tpu_custom_call.1} parent=0
    #allocation2 [shape = 'u8[512]{0}', space=smem, size = 0x200, scoped, tag = 'output window, operand 0, single buffered']
    #allocation3 [shape = 's32[1]{0}', space=sflag, size = 0x4, scoped, tag = 'scoped memory for tpu_custom_call.1']
    %10 = vsyncpa [#allocation3], 0
    // Predicated region
    $region2: #{tpu_custom_call.1} parent=1 // pred_check
      _
    $region3: #{tpu_custom_call.1} parent=1 // pred_check_branch
      %12 = sbr.rel (0) target = $region5
    $region4: #{tpu_custom_call.1} parent=1 // pred_region
      _
    $region5: #{tpu_custom_call.1} parent=1 // pred_fallthru
      _
    // Predicated region
    $region6: #{tpu_custom_call.1} parent=1 // pred_check
      _
    $region7: #{tpu_custom_call.1} parent=1 // pred_check_branch
      %14 = sbr.rel (0) target = $region9
    $region8: #{tpu_custom_call.1} parent=1 // pred_region
      _
    $region9: #{tpu_custom_call.1} parent=1 // pred_fallthru
      _
    // Predicated region
    $region10: #{tpu_custom_call.1} parent=1 // pred_check
      _
    $region11: #{tpu_custom_call.1} parent=1 // pred_check_branch
      %16 = sbr.rel (0) target = $region13
    $region12: #{tpu_custom_call.1} parent=1 // pred_region
      _
    $region13: #{tpu_custom_call.1} parent=1 // pred_fallthru
      _
    // Predicated region
    $region14: #{tpu_custom_call.1} parent=1 // pred_check
      _
    $region15: #{tpu_custom_call.1} parent=1 // pred_check_branch
      %18 = sbr.rel (0) target = $region17
    $region16: #{tpu_custom_call.1} parent=1 // pred_region
      _
    $region17: #{tpu_custom_call.1} parent=1 // pred_fallthru
      _
    // Predicated region
    $region18: #{tpu_custom_call.1} parent=1 // pred_check
      _
    $region19: #{tpu_custom_call.1} parent=1 // pred_check_branch
      %20 = sbr.rel (0) target = $region21
    $region20: #{tpu_custom_call.1} parent=1 // pred_region
      _
    $region21: #{tpu_custom_call.1} parent=1 // pred_fallthru
      _
    %v21 = vld [vmem:[%s0] sm:$0xff]
    %v22 = vld [vmem:[%s1] sm:$0xff]
    %v23 = vld [vmem:[%s2] sm:$0x1]
    %v24 = vld [vmem:[%s2 + $0x1] sm:$0x1]
    %v25 = vld [vmem:[%s2 + $0x2] sm:$0x1]
    %v26 = vld [vmem:[%s2 + $0x3] sm:$0x1]
    %v27 = vld [vmem:[%s3] sm:$0x1]
    %v28 = vld [vmem:[%s4] sm:$0x1]
    %30 = vset.pattern.permute.xlu0 0
    %31 = vperm.xlu0 %30, %v21
    %v32 = vpop.permute.xlu0 %31
    %v34 = vlaneseq
    %v35 = vshrl.u32 %v34, 7
    %v36 = vsub.s32 0, %v35
    %v37 = vrot.slane %v23, %v36
    %v38 = vmax.f32 %v32, %v37
    %39 = vset.pattern.permute.xlu0 1
    %40 = vperm.xlu0 %39, %v21
    %v41 = vpop.permute.xlu0 %40
    %v43 = vlaneseq
    %v44 = vshrl.u32 %v43, 7
    %v45 = vsub.s32 0, %v44
    %v46 = vrot.slane %v24, %v45
    %v47 = vmax.f32 %v41, %v46
    %48 = vset.pattern.permute.xlu0 2
    %49 = vperm.xlu0 %48, %v21
    %v50 = vpop.permute.xlu0 %49
    %v52 = vlaneseq
    %v53 = vshrl.u32 %v52, 7
    %v54 = vsub.s32 0, %v53
    %v55 = vrot.slane %v25, %v54
    %v56 = vmin.f32 %v50, %v55
    %57 = vset.pattern.permute.xlu0 3
    %58 = vperm.xlu0 %57, %v21
    %v59 = vpop.permute.xlu0 %58
    %v61 = vlaneseq
    %v62 = vshrl.u32 %v61, 7
    %v63 = vsub.s32 0, %v62
    %v64 = vrot.slane %v26, %v63
    %v65 = vmin.f32 %v59, %v64
    %vm66 = vcmp.lt.f32.partialorder %v38, %v56
    %vm67 = vcmp.lt.f32.partialorder %v47, %v65
    %vm68 = vmand %vm66, %vm67
    %v69 = vsub.f32 %v56, %v38
    %v70 = vsub.f32 %v65, %v47
    %v71 = vmul.f32 %v69, %v70
    %v72 = vsel %vm68, %v71, 0.0
    %73 = vrot.lane.b32.xlu0 %v21, 2
    %v74 = vpop.permute.xlu0 %73
    %v76 = vsub.f32 %v21, %v74
    %78 = vrot.lane.b32.xlu0 %v76, 127
    %v79 = vpop.permute.xlu0 %78
    %v81 = vmul.f32 %v76, %v79
    %v82 = vsub.f32 %v25, %v23
    %v83 = vsub.f32 %v26, %v24
    %v84 = vmul.f32 %v82, %v83
    %v85 = vmul.f32 %v72, 3.0
    %87 = vset.pattern.permute.xlu0 2
    %88 = vperm.xlu0 %87, %v81
    %v89 = vpop.permute.xlu0 %88
    %v91 = vlaneseq
    %v92 = vshrl.u32 %v91, 7
    %v93 = vsub.s32 0, %v92
    %v94 = vrot.slane %v84, %v93
    %v95 = vadd.f32 %v89, %v94
    %vm96 = vcmp.gt.f32.partialorder %v85, %v95
    %vm97 = vmand %vm68, %vm96
    %v98 = vlaneseq
    %v99 = vshrl.u32 %v98, 7
    %v100 = vsub.s32 0, %v99
    %v101 = vrot.slane %v28, %v100
    %102 = vset.pattern.permute.xlu0 0
    %103 = vperm.xlu0 %102, %v22
    %v104 = vpop.permute.xlu0 %103
    %vm105 = vcmp.eq.s32.totalorder %v101, %v104
    %vm106 = vmand %vm97, %vm105
    %v107 = vlaneseq
    %v108 = vand.u32 %v107, 127
    %v110 = vlaneseq
    %v111 = vshrl.u32 %v110, 7
    %v112 = vsub.s32 0, %v111
    %v113 = vrot.slane %v27, %v112
    %v115 = vsel %vm106, %v113, -1e+30
    %116 = vmax.xlane.f32.xlu0 %v115
    %v117 = vpop.xlane.xlu0 %116
    %vm118 = vcmp.eq.f32.partialorder %v113, %v117
    %vm119 = vmand %vm106, %vm118
    %v120 = vsel %vm119, %v108, 128
    %v121 = vand.u32 %v120, 65535
    %v122 = vshra.s32 %v120, 16
    %v123 = vcvt.s32.f32 %v121
    %v124 = vcvt.s32.f32 %v122
    %125 = vmin.xlane.f32.xlu0 %v124
    %v126 = vpop.xlane.xlu0 %125
    %vm127 = vcmp.eq.f32.partialorder %v124, %v126
    %v128 = vsel %vm127, %v123, inf
    %129 = vmin.xlane.f32.xlu0 %v128
    %v130 = vpop.xlane.xlu0 %129
    %v131 = vcvt.f32.s32 %v130
    %v132 = vcvt.f32.s32 %v126
    %v133 = vshll.u32 %v132, 16
    %v134 = vadd.s32 %v133, %v131
    %vm135 = vcmp.eq.s32.totalorder %v108, %v134
    %vm136 = vcmp.lt.s32.totalorder %v134, 128
    %v137 = vsel %vm136, 1, 0
    %vm138 = vcmp.eq.s32.totalorder %v137, 1
    %vm139 = vmand %vm135, %vm138
    %v140 = vsel %vm139, 1.0, 0.0
    %v141 = vrot.slane %v140, 4
    %v142 = vmax.f32 %v140, %v141
    %v143 = vrot.slane %v142, 2
    %v144 = vmax.f32 %v142, %v143
    %v145 = vrot.slane %v144, 1
    %v146 = vmax.f32 %v144, %v145
    %vm147 = vcmp.gt.f32.partialorder %v146, 0.0
    %v148 = vadd.f32 %v27, 1e-08
    %v149 = vsub.f32 1.0, %v27
    %v150 = vadd.f32 %v149, 1e-08
    %v151 = vsel %vm147, %v148, %v150
    %v152 = vlog2.pop %v151
    %v153 = vmul.f32 %v152, 0.6931472
    %vm154 = vcmask 1040384
    %v155 = vsel %vm154, %v153, 0.0
    %156 = vadd.xlane.f32.xlu0 %v155
    %v157 = vpop.xlane.xlu0 %156
    %v158 = vrot.slane %v157, 4
    %v159 = vadd.f32 %v157, %v158
    %v160 = vrot.slane %v159, 2
    %v161 = vadd.f32 %v159, %v160
    %v162 = vrot.slane %v161, 1
    %v163 = vadd.f32 %v161, %v162
    %s164 = vtos %v163
    %s165 = smul.f32 %s164, -0.0078125
    %s166 = scalar_lea.smem [#allocation2], 0
    %167 = sst [smem:[%s166]] %s165
    // Predicated region
    $region22: #{tpu_custom_call.1} parent=1 // pred_check
      _
    $region23: #{tpu_custom_call.1} parent=1 // pred_check_branch
      %169 = sbr.rel (0) target = $region25
    $region24: #{tpu_custom_call.1} parent=1 // pred_region
      %s171 = ssub.s32 16, 16
      %172 = vsyncadd [#allocation3], %s171
      %175 = dma.smem_to_hbm [#allocation2], 16, %s5, [#allocation3]
    $region25: #{tpu_custom_call.1} parent=1 // pred_fallthru
      _
    // Predicated region
    $region26: #{tpu_custom_call.1} parent=1 // pred_check
      _
    $region27: #{tpu_custom_call.1} parent=1 // pred_check_branch
      %177 = sbr.rel (0) target = $region29
    $region28: #{tpu_custom_call.1} parent=1 // pred_region
      %178 = dma.done [#allocation3], 16
    $region29: #{tpu_custom_call.1} parent=1 // pred_fallthru
      _
    %179 = sfence
    %180 = vsyncpa [#allocation3], 1

</llo_original>
